<compile_context>
chip_gen: v7x
topology: tpu7x:2x2x1
jax: 0.10.0
libtpu: 0.0.40
codegen_flags: <defaults>
</compile_context>

<pallas_src>
import functools

import jax
import jax.numpy as jnp
from jax.experimental import pallas as pl
from jax.experimental.pallas import tpu as pltpu


def _round_up(a, m):
    return ((a + m - 1) // m) * m


def _rescale_kernel(x_ref, w_ref, b_ref, o_ref, *, c_in, use_vpu):
    # x_ref : (nb, C_in, tc)    lane-dense pixel tile (native NCHW layout)
    # w_ref : (1, C_out, C_in)  1x1-conv weight, f32
    # b_ref : (1, C_out, 1)     pre-folded bias term (W @ bias), f32
    # o_ref : (nb, C_out, tc)
    x = x_ref[...]
    if use_vpu:
        # Tiny-C contraction: a (4,4)@(4,tc) dot would waste the 128x128 /
        # 256x256 MXU and pay a push + result-FIFO pop per 128-lane slab, so
        # do an unrolled VPU multiply-accumulate instead (f32 accumulate).
        acc = w_ref[:, :, 0:1] * x[:, 0:1, :]              # (nb, C_out, tc)
        for ci in range(1, c_in):
            acc = acc + w_ref[:, :, ci:ci + 1] * x[:, ci:ci + 1, :]
        y = acc
    else:
        # Large-C path: batched MXU contraction over the channel axis.
        y = jnp.einsum("oc,bct->bot", w_ref[0], x,
                       preferred_element_type=jnp.float32)
    o_ref[...] = (y - b_ref[...]).astype(o_ref.dtype)


def rescaling_forward(x, bias, scaling_mat, *,
                      target_step_bytes=2 << 20,    # ~2 MiB HBM traffic / step
                      vmem_budget_bytes=12 << 20):  # safe vs v5e 16 MiB default
    """x: (N, C_in, H, W) NCHW; bias: (1, C_in, 1, 1); scaling_mat: (C_out, C_in, 1, 1)."""
    N, C_in, H, W = x.shape
    C_out, C_in_w, kh, kw = scaling_mat.shape
    assert (kh, kw) == (1, 1), "kernel implements the 1x1-conv case"
    # TODO(synk): general kxk conv2d (k > 1) is not implemented here.
    assert C_in_w == C_in

    hw = H * W
    itemsize = jnp.dtype(x.dtype).itemsize
    per_col_bytes = itemsize * (C_in + C_out)     # in + out bytes per pixel column
    col_bytes_full = hw * per_col_bytes           # bytes per batch element

    # ---- batch-in-block: for small feature maps fold batch into the tile so
    #      each grid step still moves ~target_step_bytes of HBM traffic.
    if col_bytes_full >= target_step_bytes:
        nb = 1
    else:
        nb = int(min(N, max(1, target_step_bytes // max(1, col_bytes_full))))
        while N % nb:        # keep batch blocks exact (cheap for small N)
            nb -= 1
    n_b = N // nb

    # ---- pixel tile: multiple of 128 lanes, big enough to amortize the
    #      ~0.35us per-step overhead, capped so double-buffered in+out tiles
    #      fit the VMEM budget.
    tc = max(128, target_step_bytes // (per_col_bytes * nb))
    tc = _round_up(tc, 128)
    tc_cap = max(128, (vmem_budget_bytes // (2 * nb * per_col_bytes)) // 128 * 128)
    tc = min(tc, tc_cap)

    # ---- when there is real work, keep >= ~4 grid steps so both v7x
    #      TensorCores get tiles and the pipeline can double-buffer.
    if N * col_bytes_full >= (4 << 20):
        n_c_needed = max(1, -(-4 // n_b))
        if -(-hw // tc) < n_c_needed and hw >= n_c_needed * 128:
            tc = _round_up(-(-hw // n_c_needed), 128)

    if tc >= hw:
        tc = hw          # full-dim block: always layout-legal, single hw tile
    n_c = -(-hw // tc)

    # Free reshape (contiguous): (N, C_in, H, W) -> (N, C_in, H*W).
    x3 = x.reshape(N, C_in, hw)

    # Fold bias through the weight: conv(x - b, W) == W @ x - (W @ b).
    w_f32 = scaling_mat.reshape(C_out, C_in).astype(jnp.float32)
    b_out = (w_f32 @ bias.reshape(C_in, 1).astype(jnp.float32)).reshape(1, C_out, 1)
    w3 = w_f32.reshape(1, C_out, C_in)

    # Explicit scoped-VMEM limit: 2 buffers of (in + out) tile, plus headroom.
    tile_bytes = nb * (C_in + C_out) * tc * itemsize
    vmem_limit = int(min(100 << 20, max(16 << 20, 2 * tile_bytes + (2 << 20))))

    kernel = functools.partial(_rescale_kernel, c_in=C_in, use_vpu=(C_in <= 8))

    out3 = pl.pallas_call(
        kernel,
        out_shape=jax.ShapeDtypeStruct((N, C_out, hw), x.dtype),
        grid_spec=pltpu.PrefetchScalarGridSpec(
            num_scalar_prefetch=0,
            grid=(n_b, n_c),
            in_specs=[
                pl.BlockSpec((nb, C_in, tc), lambda b, j: (b, 0, j)),
                pl.BlockSpec((1, C_out, C_in), lambda b, j: (0, 0, 0)),
                pl.BlockSpec((1, C_out, 1), lambda b, j: (0, 0, 0)),
            ],
            out_specs=pl.BlockSpec((nb, C_out, tc), lambda b, j: (b, 0, j)),
        ),
        compiler_params=pltpu.CompilerParams(
            dimension_semantics=("parallel", "parallel"),
            vmem_limit_bytes=vmem_limit,
        ),
    )(x3, w3, b_out)

    return out3.reshape(N, C_out, H, W)


if __name__ == "__main__":
    key = jax.random.PRNGKey(0)
    k_x, k_b, k_w = jax.random.split(key, 3)

    N, C_in, H, W = 2, 4, 16, 16
    C_out = 4

    x = jax.random.normal(k_x, (N, C_in, H, W), dtype=jnp.float32)
    bias = jax.random.normal(k_b, (1, C_in, 1, 1), dtype=jnp.float32)
    scaling_mat = jax.random.normal(k_w, (C_out, C_in, 1, 1), dtype=jnp.float32)

    out = rescaling_forward(x, bias, scaling_mat)
    out = jax.block_until_ready(out)

    # Reference: (x - bias) then 1x1 conv == einsum over channels.
    ref = jnp.einsum(
        "oc,nchw->nohw", scaling_mat.reshape(C_out, C_in), x - bias
    )
    assert out.shape == (N, C_out, H, W)
    assert jnp.allclose(out, ref, atol=1e-4, rtol=1e-4)

    print("KERNEL_OK")
</pallas_src>

<mosaic_0001>
module attributes {stable_mosaic.version = 11 : i64} {
  func.func @_rescale_kernel(%arg0: i32, %arg1: i32, %arg2: memref<2x4x256xf32, #tpu.memory_space<vmem>>, %arg3: memref<1x4x4xf32, #tpu.memory_space<vmem>>, %arg4: memref<1x4x1xf32, #tpu.memory_space<vmem>>, %arg5: memref<2x4x256xf32, #tpu.memory_space<vmem>>) attributes {dimension_semantics = [#tpu.dimension_semantics<parallel>, #tpu.dimension_semantics<parallel>], iteration_bounds = array<i64: 1, 1>, scalar_prefetch = 0 : i64, scratch_operands = 0 : i64, tpu.core_type = #tpu.core_type<tc>, window_params = [{transform_indices = @transform_0, window_bounds = array<i64: 2, 4, 256>}, {pipeline_mode = #tpu.pipeline_mode<synchronous>, transform_indices = @transform_1, window_bounds = array<i64: 1, 4, 4>}, {pipeline_mode = #tpu.pipeline_mode<synchronous>, transform_indices = @transform_2, window_bounds = array<i64: 1, 4, 1>}, {transform_indices = @transform_3, window_bounds = array<i64: 2, 4, 256>}]} {
    %c0 = arith.constant 0 : index
    %c0_0 = arith.constant 0 : index
    %c0_1 = arith.constant 0 : index
    %0 = vector.load %arg2[%c0, %c0_0, %c0_1] : memref<2x4x256xf32, #tpu.memory_space<vmem>>, vector<2x4x256xf32>
    %c0_2 = arith.constant 0 : index
    %c0_3 = arith.constant 0 : index
    %c0_4 = arith.constant 0 : index
    %1 = vector.load %arg3[%c0_2, %c0_3, %c0_4] : memref<1x4x4xf32, #tpu.memory_space<vmem>>, vector<1x4x1xf32>
    %2 = vector.extract_strided_slice %0 {offsets = [0, 0, 0], sizes = [2, 1, 256], strides = [1, 1, 1]} : vector<2x4x256xf32> to vector<2x1x256xf32>
    %3 = vector.broadcast %1 : vector<1x4x1xf32> to vector<2x4x256xf32>
    %4 = vector.broadcast %2 : vector<2x1x256xf32> to vector<2x4x256xf32>
    %5 = arith.mulf %3, %4 : vector<2x4x256xf32>
    %c0_5 = arith.constant 0 : index
    %c0_6 = arith.constant 0 : index
    %c1 = arith.constant 1 : index
    %6 = vector.load %arg3[%c0_5, %c0_6, %c1] : memref<1x4x4xf32, #tpu.memory_space<vmem>>, vector<1x4x1xf32>
    %7 = vector.extract_strided_slice %0 {offsets = [0, 1, 0], sizes = [2, 1, 256], strides = [1, 1, 1]} : vector<2x4x256xf32> to vector<2x1x256xf32>
    %8 = vector.broadcast %6 : vector<1x4x1xf32> to vector<2x4x256xf32>
    %9 = vector.broadcast %7 : vector<2x1x256xf32> to vector<2x4x256xf32>
    %10 = arith.mulf %8, %9 : vector<2x4x256xf32>
    %11 = arith.addf %5, %10 : vector<2x4x256xf32>
    %c0_7 = arith.constant 0 : index
    %c0_8 = arith.constant 0 : index
    %c2 = arith.constant 2 : index
    %12 = vector.load %arg3[%c0_7, %c0_8, %c2] : memref<1x4x4xf32, #tpu.memory_space<vmem>>, vector<1x4x1xf32>
    %13 = vector.extract_strided_slice %0 {offsets = [0, 2, 0], sizes = [2, 1, 256], strides = [1, 1, 1]} : vector<2x4x256xf32> to vector<2x1x256xf32>
    %14 = vector.broadcast %12 : vector<1x4x1xf32> to vector<2x4x256xf32>
    %15 = vector.broadcast %13 : vector<2x1x256xf32> to vector<2x4x256xf32>
    %16 = arith.mulf %14, %15 : vector<2x4x256xf32>
    %17 = arith.addf %11, %16 : vector<2x4x256xf32>
    %c0_9 = arith.constant 0 : index
    %c0_10 = arith.constant 0 : index
    %c3 = arith.constant 3 : index
    %18 = vector.load %arg3[%c0_9, %c0_10, %c3] : memref<1x4x4xf32, #tpu.memory_space<vmem>>, vector<1x4x1xf32>
    %19 = vector.extract_strided_slice %0 {offsets = [0, 3, 0], sizes = [2, 1, 256], strides = [1, 1, 1]} : vector<2x4x256xf32> to vector<2x1x256xf32>
    %20 = vector.broadcast %18 : vector<1x4x1xf32> to vector<2x4x256xf32>
    %21 = vector.broadcast %19 : vector<2x1x256xf32> to vector<2x4x256xf32>
    %22 = arith.mulf %20, %21 : vector<2x4x256xf32>
    %23 = arith.addf %17, %22 : vector<2x4x256xf32>
    %c0_11 = arith.constant 0 : index
    %c0_12 = arith.constant 0 : index
    %c0_13 = arith.constant 0 : index
    %24 = vector.load %arg4[%c0_11, %c0_12, %c0_13] : memref<1x4x1xf32, #tpu.memory_space<vmem>>, vector<1x4x1xf32>
    %25 = vector.broadcast %24 : vector<1x4x1xf32> to vector<2x4x256xf32>
    %26 = arith.subf %23, %25 : vector<2x4x256xf32>
    %c0_14 = arith.constant 0 : index
    %c0_15 = arith.constant 0 : index
    %c0_16 = arith.constant 0 : index
    %27 = vector.load %arg5[%c0_14, %c0_15, %c0_16] : memref<2x4x256xf32, #tpu.memory_space<vmem>>, vector<2x4x256xf32>
    tpu.vector_store %arg5[%c0_14, %c0_15, %c0_16], %26 {strides = array<i32>} : memref<2x4x256xf32, #tpu.memory_space<vmem>>, vector<2x4x256xf32>,
    return
  }
  func.func @transform_0(%arg0: i32, %arg1: i32) -> (i32, i32, i32) {
    %c0_i32 = arith.constant 0 : i32
    %c0_i32_0 = arith.constant 0 : i32
    return %arg0, %c0_i32, %arg1 : i32, i32, i32
  }
  func.func @transform_1(%arg0: i32, %arg1: i32) -> (i32, i32, i32) {
    %c0_i32 = arith.constant 0 : i32
    %c0_i32_0 = arith.constant 0 : i32
    %c0_i32_1 = arith.constant 0 : i32
    %c0_i32_2 = arith.constant 0 : i32
    return %c0_i32, %c0_i32_0, %c0_i32_1 : i32, i32, i32
  }
  func.func @transform_2(%arg0: i32, %arg1: i32) -> (i32, i32, i32) {
    %c0_i32 = arith.constant 0 : i32
    %c0_i32_0 = arith.constant 0 : i32
    %c0_i32_1 = arith.constant 0 : i32
    %c0_i32_2 = arith.constant 0 : i32
    return %c0_i32, %c0_i32_0, %c0_i32_1 : i32, i32, i32
  }
  func.func @transform_3(%arg0: i32, %arg1: i32) -> (i32, i32, i32) {
    %c0_i32 = arith.constant 0 : i32
    %c0_i32_0 = arith.constant 0 : i32
    return %arg0, %c0_i32, %arg1 : i32, i32, i32
  }
}

</mosaic_0001>

<llo_original>
// kernel: tpu_custom_call.1
$region0: #{tpu_custom_call.1}
  #allocation0 [shape = 'u32[]', space=smem, size = 0x4, offset = 0x4, fixed_abs, tag = 'smem constant byte address 0x4 - core index']
  #allocation1 [shape = 'u32[144,128]{1,0:T(1,128)}', space=vmem, size = 0x12000, scoped, tag = 'internal scratch']
  %s0 = inlined_call_operand.hbm [shape: f32[2,4,256], index: 0, kind: input, shape index: {}]
  %s1 = inlined_call_operand.vmem [shape: f32[1,4,4], index: 1, kind: input, shape index: {}]
  %s2 = inlined_call_operand.vmem [shape: f32[1,4,1], index: 2, kind: input, shape index: {}]
  %s3 = inlined_call_operand.hbm [shape: f32[2,4,256], index: 3, kind: output, shape index: {}]
  %s4 = sld [smem:[#allocation0]]
  $region26: #{tpu_custom_call.1} parent=0
    _
  %s6 = ssub.s32 1, %s4
  %s7 = scalar_select 0, %s6, %s4
  $region1: #{tpu_custom_call.1} parent=0
    #allocation2 [shape = 'u8[8192]{0}', space=vmem, size = 0x2000, scoped, tag = 'input window, operand 0, single buffered']
    #allocation3 [shape = 's32[1]{0}', space=sflag, size = 0x4, scoped, tag = 'scoped memory for tpu_custom_call.1']
    #allocation4 [shape = 's32[1]{0}', space=sflag, size = 0x4, scoped, tag = 'scoped memory for tpu_custom_call.1']
    #allocation5 [shape = 'u8[8192]{0}', space=vmem, size = 0x2000, scoped, tag = 'output window, operand 0, single buffered']
    %8 = vsyncpa [#allocation3], 0
    %9 = vsyncpa [#allocation4], 0
    // Predicated region
    $region2: #{tpu_custom_call.1} parent=1 // pred_check
      _
    $region3: #{tpu_custom_call.1} parent=1 // pred_check_branch
      %11 = sbr.rel (0) target = $region5
    $region4: #{tpu_custom_call.1} parent=1 // pred_region
      %s13 = ssub.s32 256, 256
      %14 = vsyncadd [#allocation3], %s13
      %s15 = sshll.u32 [#allocation2], 4
      %s16 = int_to_ptr.vmem [resolvable:$true] %s15
      %21 = dma.hbm_to_vmem [thread:$0]  %s0, 256, %s16, [#allocation3], 128, 128, 8
    $region5: #{tpu_custom_call.1} parent=1 // pred_fallthru
      _
    // Predicated region
    $region6: #{tpu_custom_call.1} parent=1 // pred_check
      _
    $region7: #{tpu_custom_call.1} parent=1 // pred_check_branch
      %23 = sbr.rel (0) target = $region9
    $region8: #{tpu_custom_call.1} parent=1 // pred_region
      _
    $region9: #{tpu_custom_call.1} parent=1 // pred_fallthru
      _
    // Predicated region
    $region10: #{tpu_custom_call.1} parent=1 // pred_check
      _
    $region11: #{tpu_custom_call.1} parent=1 // pred_check_branch
      %25 = sbr.rel (0) target = $region13
    $region12: #{tpu_custom_call.1} parent=1 // pred_region
      _
    $region13: #{tpu_custom_call.1} parent=1 // pred_fallthru
      _
    // Predicated region
    $region14: #{tpu_custom_call.1} parent=1 // pred_check
      _
    $region15: #{tpu_custom_call.1} parent=1 // pred_check_branch
      %27 = sbr.rel (0) target = $region17
    $region16: #{tpu_custom_call.1} parent=1 // pred_region
      %28 = dma.done [#allocation3], 256
    $region17: #{tpu_custom_call.1} parent=1 // pred_fallthru
      _
    %v29 = vld [vmem:[#allocation2] sm:$0xff]
    %v30 = vld [vmem:[#allocation2 + $0x8] sm:$0xff]
    %v31 = vld [vmem:[%s1] sm:$0xf]
    %33 = vset.pattern.permute.xlu0 0
    %34 = vperm.xlu0 %33, %v31
    %v35 = vpop.permute.xlu0 %34
    %v39 = vlaneseq
    %v40 = vshrl.u32 %v39, 7
    %v41 = vsub.s32 0, %v40
    %v42 = vrot.slane %v29, %v41
    %v43 = vlaneseq
    %v44 = vshrl.u32 %v43, 7
    %v45 = vsub.s32 4, %v44
    %v46 = vrot.slane %v29, %v45
    %v47 = vlaneseq
    %v48 = vshrl.u32 %v47, 7
    %v49 = vsub.s32 0, %v48
    %v50 = vrot.slane %v30, %v49
    %v51 = vlaneseq
    %v52 = vshrl.u32 %v51, 7
    %v53 = vsub.s32 4, %v52
    %v54 = vrot.slane %v30, %v53
    %v59 = vlaneseq
    %v60 = vshrl.u32 %v59, 7
    %v61 = vsub.s32 0, %v60
    %v62 = vrot.slane %v42, %v61
    %v63 = vlaneseq
    %v64 = vshrl.u32 %v63, 7
    %v65 = vsub.s32 0, %v64
    %v66 = vrot.slane %v46, %v65
    %v67 = vlaneseq
    %v68 = vshrl.u32 %v67, 7
    %v69 = vsub.s32 0, %v68
    %v70 = vrot.slane %v50, %v69
    %v71 = vlaneseq
    %v72 = vshrl.u32 %v71, 7
    %v73 = vsub.s32 0, %v72
    %v74 = vrot.slane %v54, %v73
    %v75 = vmul.f32 %v35, %v62
    %v76 = vmul.f32 %v35, %v66
    %v77 = vmul.f32 %v35, %v70
    %v78 = vmul.f32 %v35, %v74
    %79 = vset.pattern.permute.xlu0 1
    %80 = vperm.xlu0 %79, %v31
    %v81 = vpop.permute.xlu0 %80
    %v83 = vlaneseq
    %v84 = vshrl.u32 %v83, 7
    %v85 = vsub.s32 1, %v84
    %v86 = vrot.slane %v29, %v85
    %v87 = vlaneseq
    %v88 = vshrl.u32 %v87, 7
    %v89 = vsub.s32 5, %v88
    %v90 = vrot.slane %v29, %v89
    %v91 = vlaneseq
    %v92 = vshrl.u32 %v91, 7
    %v93 = vsub.s32 1, %v92
    %v94 = vrot.slane %v30, %v93
    %v95 = vlaneseq
    %v96 = vshrl.u32 %v95, 7
    %v97 = vsub.s32 5, %v96
    %v98 = vrot.slane %v30, %v97
    %v103 = vlaneseq
    %v104 = vshrl.u32 %v103, 7
    %v105 = vsub.s32 1, %v104
    %v106 = vrot.slane %v86, %v105
    %v107 = vlaneseq
    %v108 = vshrl.u32 %v107, 7
    %v109 = vsub.s32 1, %v108
    %v110 = vrot.slane %v90, %v109
    %v111 = vlaneseq
    %v112 = vshrl.u32 %v111, 7
    %v113 = vsub.s32 1, %v112
    %v114 = vrot.slane %v94, %v113
    %v115 = vlaneseq
    %v116 = vshrl.u32 %v115, 7
    %v117 = vsub.s32 1, %v116
    %v118 = vrot.slane %v98, %v117
    %v119 = vmul.f32 %v81, %v106
    %v120 = vmul.f32 %v81, %v110
    %v121 = vmul.f32 %v81, %v114
    %v122 = vmul.f32 %v81, %v118
    %v123 = vadd.f32 %v75, %v119
    %v124 = vadd.f32 %v76, %v120
    %v125 = vadd.f32 %v77, %v121
    %v126 = vadd.f32 %v78, %v122
    %127 = vset.pattern.permute.xlu0 2
    %128 = vperm.xlu0 %127, %v31
    %v129 = vpop.permute.xlu0 %128
    %v131 = vlaneseq
    %v132 = vshrl.u32 %v131, 7
    %v133 = vsub.s32 2, %v132
    %v134 = vrot.slane %v29, %v133
    %v135 = vlaneseq
    %v136 = vshrl.u32 %v135, 7
    %v137 = vsub.s32 6, %v136
    %v138 = vrot.slane %v29, %v137
    %v139 = vlaneseq
    %v140 = vshrl.u32 %v139, 7
    %v141 = vsub.s32 2, %v140
    %v142 = vrot.slane %v30, %v141
    %v143 = vlaneseq
    %v144 = vshrl.u32 %v143, 7
    %v145 = vsub.s32 6, %v144
    %v146 = vrot.slane %v30, %v145
    %v151 = vlaneseq
    %v152 = vshrl.u32 %v151, 7
    %v153 = vsub.s32 2, %v152
    %v154 = vrot.slane %v134, %v153
    %v155 = vlaneseq
    %v156 = vshrl.u32 %v155, 7
    %v157 = vsub.s32 2, %v156
    %v158 = vrot.slane %v138, %v157
    %v159 = vlaneseq
    %v160 = vshrl.u32 %v159, 7
    %v161 = vsub.s32 2, %v160
    %v162 = vrot.slane %v142, %v161
    %v163 = vlaneseq
    %v164 = vshrl.u32 %v163, 7
    %v165 = vsub.s32 2, %v164
    %v166 = vrot.slane %v146, %v165
    %v167 = vmul.f32 %v129, %v154
    %v168 = vmul.f32 %v129, %v158
    %v169 = vmul.f32 %v129, %v162
    %v170 = vmul.f32 %v129, %v166
    %v171 = vadd.f32 %v123, %v167
    %v172 = vadd.f32 %v124, %v168
    %v173 = vadd.f32 %v125, %v169
    %v174 = vadd.f32 %v126, %v170
    %175 = vset.pattern.permute.xlu0 3
    %176 = vperm.xlu0 %175, %v31
    %v177 = vpop.permute.xlu0 %176
    %v179 = vlaneseq
    %v180 = vshrl.u32 %v179, 7
    %v181 = vsub.s32 3, %v180
    %v182 = vrot.slane %v29, %v181
    %v183 = vlaneseq
    %v184 = vshrl.u32 %v183, 7
    %v185 = vsub.s32 7, %v184
    %v186 = vrot.slane %v29, %v185
    %v187 = vlaneseq
    %v188 = vshrl.u32 %v187, 7
    %v189 = vsub.s32 3, %v188
    %v190 = vrot.slane %v30, %v189
    %v191 = vlaneseq
    %v192 = vshrl.u32 %v191, 7
    %v193 = vsub.s32 7, %v192
    %v194 = vrot.slane %v30, %v193
    %v199 = vlaneseq
    %v200 = vshrl.u32 %v199, 7
    %v201 = vsub.s32 3, %v200
    %v202 = vrot.slane %v182, %v201
    %v203 = vlaneseq
    %v204 = vshrl.u32 %v203, 7
    %v205 = vsub.s32 3, %v204
    %v206 = vrot.slane %v186, %v205
    %v207 = vlaneseq
    %v208 = vshrl.u32 %v207, 7
    %v209 = vsub.s32 3, %v208
    %v210 = vrot.slane %v190, %v209
    %v211 = vlaneseq
    %v212 = vshrl.u32 %v211, 7
    %v213 = vsub.s32 3, %v212
    %v214 = vrot.slane %v194, %v213
    %v215 = vmul.f32 %v177, %v202
    %v216 = vmul.f32 %v177, %v206
    %v217 = vmul.f32 %v177, %v210
    %v218 = vmul.f32 %v177, %v214
    %v219 = vadd.f32 %v171, %v215
    %v220 = vadd.f32 %v172, %v216
    %v221 = vadd.f32 %v173, %v217
    %v222 = vadd.f32 %v174, %v218
    %v223 = vld [vmem:[%s2] sm:$0xf]
    %225 = vset.pattern.permute.xlu0 0
    %226 = vperm.xlu0 %225, %v223
    %v227 = vpop.permute.xlu0 %226
    %v229 = vsub.f32 %v219, %v227
    %v230 = vsub.f32 %v220, %v227
    %v231 = vsub.f32 %v221, %v227
    %v232 = vsub.f32 %v222, %v227
    %v237 = vcombine.low %v229, %v230
    %v238 = vcombine.low %v231, %v232
    %241 = vst [vmem:[#allocation5] sm:$0xff] %v237
    %242 = vst [vmem:[#allocation5 + $0x8] sm:$0xff] %v238
    // Predicated region
    $region18: #{tpu_custom_call.1} parent=1 // pred_check
      _
    $region19: #{tpu_custom_call.1} parent=1 // pred_check_branch
      %244 = sbr.rel (0) target = $region21
    $region20: #{tpu_custom_call.1} parent=1 // pred_region
      %s246 = ssub.s32 256, 256
      %247 = vsyncadd [#allocation4], %s246
      %s248 = sshll.u32 [#allocation5], 4
      %s249 = int_to_ptr.vmem [resolvable:$true] %s248
      %254 = dma.vmem_to_hbm [thread:$0]  %s249, 256, %s3, [#allocation4], 128, 128, 8
    $region21: #{tpu_custom_call.1} parent=1 // pred_fallthru
      _
    // Predicated region
    $region22: #{tpu_custom_call.1} parent=1 // pred_check
      _
    $region23: #{tpu_custom_call.1} parent=1 // pred_check_branch
      %256 = sbr.rel (0) target = $region25
    $region24: #{tpu_custom_call.1} parent=1 // pred_region
      %257 = dma.done [#allocation4], 256
    $region25: #{tpu_custom_call.1} parent=1 // pred_fallthru
      _
    %258 = vsyncpa [#allocation3], 1
    %259 = vsyncpa [#allocation4], 1

</llo_original>
